<compile_context>
chip_gen: v6e
topology: v6e:2x2x1
jax: 0.10.0
libtpu: 0.0.40
codegen_flags: <defaults>
</compile_context>

<pallas_src>
import jax
import jax.numpy as jnp
from jax.experimental import pallas as pl
from jax.experimental.pallas import tpu as pltpu


LANE = 128
BATCH_ALIGN = 16          # native bf16 sublane tile height (safe for f32 too)


def _round_up(x, m):
    return (x + m - 1) // m * m


def _vmem_budget():
    """Generation-aware VMEM (budget_for_tiling, vmem_limit_bytes)."""
    cap = 64 * 1024 * 1024                     # conservative default = v7x per-TC VMEM
    try:
        cap = int(pltpu.get_tpu_info().vmem_capacity_bytes)
    except Exception:
        pass
    limit = min((cap * 3) // 4, 112 * 1024 * 1024)   # 48 MiB on v7x, 96 MiB on v5e/v6e
    budget = limit - 8 * 1024 * 1024                  # headroom for compiler scratch
    return budget, limit


def _choose_batch_tile(b_rounded, d_pad, p_pad, budget_bytes, max_tile=2048):
    """Largest batch tile (multiple of BATCH_ALIGN) whose buffers fit the VMEM budget."""
    # Resident weights/biases: single-buffered (pl.Buffered(1)).
    fixed = d_pad * d_pad * 2 + d_pad * p_pad * 2 + d_pad * 4 + p_pad * 4
    # Per batch row:
    #   double-buffered streams: cls in (bf16) + pooler out (bf16) + logits out (f32)
    #   in-kernel temporaries:   pooled f32 + its bf16 recast (single instance)
    per_row = 2 * (d_pad * 2 + d_pad * 2 + p_pad * 4) + d_pad * (4 + 2)
    avail = max(budget_bytes - fixed, per_row * BATCH_ALIGN)
    tb = min(max_tile, b_rounded, avail // per_row)
    tb = max(BATCH_ALIGN, (tb // BATCH_ALIGN) * BATCH_ALIGN)
    # Keep >= 2 grid steps when the batch allows it: the ("parallel",) batch axis
    # shards across v7x's two TensorCores (harmless on single-TC v5e/v6e).
    if b_rounded >= 2 * BATCH_ALIGN:
        half = max(BATCH_ALIGN, (b_rounded // 2 // BATCH_ALIGN) * BATCH_ALIGN)
        tb = min(tb, half)
    return tb


def _resident_spec(block_shape):
    """BlockSpec for an operand kept resident in VMEM across all grid steps."""
    index_map = lambda i: (0,) * len(block_shape)
    if hasattr(pl, "Buffered"):
        try:
            # Constant index_map -> single-buffer (double-buffering only wastes VMEM).
            return pl.BlockSpec(block_shape, index_map, pipeline_mode=pl.Buffered(1))
        except TypeError:
            pass
    return pl.BlockSpec(block_shape, index_map)


def bert_spc_kernel(cls_ref, wp_ref, bp_ref, wd_ref, bd_ref, logits_ref, pooler_ref):
    # BERT pooler: tanh(cls @ Wp + bp).  bf16 MXU operands, f32 accumulation;
    # bias add + tanh kept in f32 (v5e has no bf16 VPU/EUP path).
    pooled = jnp.tanh(
        jnp.dot(cls_ref[...], wp_ref[...], preferred_element_type=jnp.float32)
        + bp_ref[...]
    )
    pooled_bf16 = pooled.astype(jnp.bfloat16)

    # Stream pooler_out back in bf16: it is the largest per-tile HBM write and the
    # downstream matmul consumes the bf16 cast anyway (wrapper restores f32).
    pooler_ref[...] = pooled_bf16

    # Dropout: nn.Dropout in eval mode is identity.
    # TODO(synk): training-mode dropout (pltpu.prng_random_bits mask) not implemented.

    # Classifier head: logits = pooled @ Wd + bd.  P is padded to 128 lanes so this
    # store is a full unmasked lane-dense vst; wrapper slices back to polarities_dim.
    logits_ref[...] = (
        jnp.dot(pooled_bf16, wd_ref[...], preferred_element_type=jnp.float32)
        + bd_ref[...]
    )


def prepare_bert_spc_params(wp, bp, wd, bd):
    """One-time (init-time) padding + bf16 cast of the weights, hoisted out of forward."""
    D, P = wp.shape[0], wd.shape[1]
    d_pad, p_pad = _round_up(D, LANE), _round_up(P, LANE)

    def pad2(x, shape, dtype):
        x = jnp.asarray(x, dtype)
        if x.ndim == 1:
            x = x.reshape(1, -1)
        if x.shape == shape:          # no padding needed -> just the dtype cast
            return x
        return jnp.zeros(shape, dtype).at[: x.shape[0], : x.shape[1]].set(x)

    return {
        "wp": pad2(wp, (d_pad, d_pad), jnp.bfloat16),
        "bp": pad2(bp, (1, d_pad), jnp.float32),
        "wd": pad2(wd, (d_pad, p_pad), jnp.bfloat16),
        "bd": pad2(bd, (1, p_pad), jnp.float32),
        "bert_dim": D,
        "polarities_dim": P,
    }


def bert_spc_forward(bert_indices, emb_table, params):
    """Returns (logits, pooler_out), matching BERT_SPC.forward semantics."""
    B = bert_indices.shape[0]
    D, P = params["bert_dim"], params["polarities_dim"]
    wp_p, bp_p, wd_p, bd_p = params["wp"], params["bp"], params["wd"], params["bd"]
    d_pad, p_pad = wp_p.shape[1], wd_p.shape[1]

    vmem_budget, vmem_limit = _vmem_budget()
    b_al = _round_up(B, BATCH_ALIGN)
    tb = _choose_batch_tile(b_al, d_pad, p_pad, vmem_budget)
    b_pad = _round_up(b_al, tb)
    grid_b = b_pad // tb

    # Glue: CLS-token gather + bf16 cast in one pass; batch padding is done by
    # gathering row 0 for the extra rows (their outputs are sliced off below).
    idx = jnp.zeros((b_pad,), jnp.int32).at[:B].set(bert_indices[:, 0].astype(jnp.int32))
    cls_p = jnp.take(emb_table, idx, axis=0).astype(jnp.bfloat16)
    if d_pad != D:
        cls_p = jnp.pad(cls_p, ((0, 0), (0, d_pad - D)))
    # TODO(synk): fuse this gather into the kernel (scalar-prefetch the indices and
    # DMA-gather rows of emb_table from HBM) to skip one extra B x D pass through HBM.

    cost = pl.CostEstimate(
        flops=int(2 * b_pad * d_pad * d_pad + 2 * b_pad * d_pad * p_pad),
        transcendentals=int(b_pad * d_pad),
        bytes_accessed=int(
            b_pad * d_pad * 2                              # cls in (bf16)
            + d_pad * d_pad * 2 + d_pad * p_pad * 2        # weights (bf16)
            + d_pad * 4 + p_pad * 4                        # biases (f32)
            + b_pad * d_pad * 2                            # pooler out (bf16)
            + b_pad * p_pad * 4                            # logits out (f32)
        ),
    )

    logits_p, pooler_p = pl.pallas_call(
        bert_spc_kernel,
        out_shape=(
            jax.ShapeDtypeStruct((b_pad, p_pad), jnp.float32),
            jax.ShapeDtypeStruct((b_pad, d_pad), jnp.bfloat16),
        ),
        grid_spec=pltpu.PrefetchScalarGridSpec(
            num_scalar_prefetch=0,
            grid=(grid_b,),
            in_specs=[
                pl.BlockSpec((tb, d_pad), lambda i: (i, 0)),   # cls tile (streamed)
                _resident_spec((d_pad, d_pad)),                # Wp (resident, 1-buf)
                _resident_spec((1, d_pad)),                    # bp (resident, 1-buf)
                _resident_spec((d_pad, p_pad)),                # Wd (resident, 1-buf)
                _resident_spec((1, p_pad)),                    # bd (resident, 1-buf)
            ],
            out_specs=(
                pl.BlockSpec((tb, p_pad), lambda i: (i, 0)),   # logits (padded, f32)
                pl.BlockSpec((tb, d_pad), lambda i: (i, 0)),   # pooler_out (padded, bf16)
            ),
        ),
        compiler_params=pltpu.CompilerParams(
            dimension_semantics=("parallel",),
            vmem_limit_bytes=int(vmem_limit),
        ),
        cost_estimate=cost,
    )(cls_p, wp_p, bp_p, wd_p, bd_p)

    # Slice the lane/sublane padding off; restore f32 for the returned pooler_out.
    return logits_p[:B, :P], pooler_p[:B, :D].astype(jnp.float32)


if __name__ == "__main__":
    # Small, deterministic config (consistent with BERT_SPC's forward).
    batch = 4
    seq_len = 8
    vocab = 30
    bert_dim = 32        # opt.bert_dim
    polarities_dim = 3   # opt.polarities_dim

    key = jax.random.PRNGKey(0)
    k_idx, k_emb, k_wp, k_bp, k_wd, k_bd = jax.random.split(key, 6)

    bert_indices = jax.random.randint(k_idx, (batch, seq_len), 0, vocab,
                                      dtype=jnp.int32)
    emb_table = jax.random.normal(k_emb, (vocab, bert_dim), dtype=jnp.float32) * 0.02
    wp = jax.random.normal(k_wp, (bert_dim, bert_dim), dtype=jnp.float32) * 0.02
    bp = jax.random.normal(k_bp, (1, bert_dim), dtype=jnp.float32) * 0.02
    wd = jax.random.normal(k_wd, (bert_dim, polarities_dim), dtype=jnp.float32) * 0.02
    bd = jax.random.normal(k_bd, (1, polarities_dim), dtype=jnp.float32) * 0.02

    params = prepare_bert_spc_params(wp, bp, wd, bd)   # init-time weight prep
    logits, pooler_out = bert_spc_forward(bert_indices, emb_table, params)
    jax.block_until_ready((logits, pooler_out))

    # Reference check (pure JAX, f32).  The kernel matmuls run in bf16 on the MXU
    # and pooler_out round-trips through a bf16 store, so tolerances are relaxed.
    cls_ref = jnp.take(emb_table, bert_indices[:, 0], axis=0)
    pooled_ref = jnp.tanh(cls_ref @ wp + bp)
    logits_ref = pooled_ref @ wd + bd
    assert logits.shape == (batch, polarities_dim)
    assert pooler_out.shape == (batch, bert_dim)
    assert jnp.allclose(pooler_out, pooled_ref, atol=1e-2, rtol=1e-2)
    assert jnp.allclose(logits, logits_ref, atol=1e-2, rtol=1e-2)

    print("KERNEL_OK")
</pallas_src>

<mosaic_0001>
module attributes {stable_mosaic.version = 11 : i64} {
  func.func @bert_spc_kernel(%arg0: i32, %arg1: memref<16x128xbf16, #tpu.memory_space<vmem>>, %arg2: memref<128x128xbf16, #tpu.memory_space<vmem>>, %arg3: memref<1x128xf32, #tpu.memory_space<vmem>>, %arg4: memref<128x128xbf16, #tpu.memory_space<vmem>>, %arg5: memref<1x128xf32, #tpu.memory_space<vmem>>, %arg6: memref<16x128xf32, #tpu.memory_space<vmem>>, %arg7: memref<16x128xbf16, #tpu.memory_space<vmem>>) attributes {dimension_semantics = [#tpu.dimension_semantics<parallel>], iteration_bounds = array<i64: 1>, scalar_prefetch = 0 : i64, scratch_operands = 0 : i64, tpu.core_type = #tpu.core_type<tc>, window_params = [{transform_indices = @transform_0, window_bounds = array<i64: 16, 128>}, {pipeline_mode = #tpu.pipeline_mode<synchronous>, transform_indices = @transform_1, window_bounds = array<i64: 128, 128>}, {pipeline_mode = #tpu.pipeline_mode<synchronous>, transform_indices = @transform_2, window_bounds = array<i64: 1, 128>}, {pipeline_mode = #tpu.pipeline_mode<synchronous>, transform_indices = @transform_3, window_bounds = array<i64: 128, 128>}, {pipeline_mode = #tpu.pipeline_mode<synchronous>, transform_indices = @transform_4, window_bounds = array<i64: 1, 128>}, {transform_indices = @transform_5, window_bounds = array<i64: 16, 128>}, {transform_indices = @transform_6, window_bounds = array<i64: 16, 128>}]} {
    %c0 = arith.constant 0 : index
    %c0_0 = arith.constant 0 : index
    %0 = vector.load %arg1[%c0, %c0_0] : memref<16x128xbf16, #tpu.memory_space<vmem>>, vector<16x128xbf16>
    %c0_1 = arith.constant 0 : index
    %c0_2 = arith.constant 0 : index
    %1 = vector.load %arg2[%c0_1, %c0_2] : memref<128x128xbf16, #tpu.memory_space<vmem>>, vector<128x128xbf16>
    %cst = arith.constant dense<0.000000e+00> : vector<16x128xf32>
    %2 = tpu.matmul %0, %1, %cst {dimension_numbers = #tpu.dot_dimension_numbers<[1], [0], [0], [1], [0, 0, 1, 1], [], []>} : vector<16x128xbf16>, vector<128x128xbf16>, vector<16x128xf32> -> vector<16x128xf32>
    %c0_3 = arith.constant 0 : index
    %c0_4 = arith.constant 0 : index
    %3 = vector.load %arg3[%c0_3, %c0_4] : memref<1x128xf32, #tpu.memory_space<vmem>>, vector<1x128xf32>
    %4 = vector.broadcast %3 : vector<1x128xf32> to vector<16x128xf32>
    %5 = arith.addf %2, %4 : vector<16x128xf32>
    %6 = math.tanh %5 : vector<16x128xf32>
    %7 = arith.truncf %6 : vector<16x128xf32> to vector<16x128xbf16>
    %c0_5 = arith.constant 0 : index
    %c0_6 = arith.constant 0 : index
    %8 = vector.load %arg7[%c0_5, %c0_6] : memref<16x128xbf16, #tpu.memory_space<vmem>>, vector<16x128xbf16>
    tpu.vector_store %arg7[%c0_5, %c0_6], %7 {strides = array<i32>} : memref<16x128xbf16, #tpu.memory_space<vmem>>, vector<16x128xbf16>,
    %c0_7 = arith.constant 0 : index
    %c0_8 = arith.constant 0 : index
    %9 = vector.load %arg4[%c0_7, %c0_8] : memref<128x128xbf16, #tpu.memory_space<vmem>>, vector<128x128xbf16>
    %cst_9 = arith.constant dense<0.000000e+00> : vector<16x128xf32>
    %10 = tpu.matmul %7, %9, %cst_9 {dimension_numbers = #tpu.dot_dimension_numbers<[1], [0], [0], [1], [0, 0, 1, 1], [], []>} : vector<16x128xbf16>, vector<128x128xbf16>, vector<16x128xf32> -> vector<16x128xf32>
    %c0_10 = arith.constant 0 : index
    %c0_11 = arith.constant 0 : index
    %11 = vector.load %arg5[%c0_10, %c0_11] : memref<1x128xf32, #tpu.memory_space<vmem>>, vector<1x128xf32>
    %12 = vector.broadcast %11 : vector<1x128xf32> to vector<16x128xf32>
    %13 = arith.addf %10, %12 : vector<16x128xf32>
    %c0_12 = arith.constant 0 : index
    %c0_13 = arith.constant 0 : index
    %14 = vector.load %arg6[%c0_12, %c0_13] : memref<16x128xf32, #tpu.memory_space<vmem>>, vector<16x128xf32>
    tpu.vector_store %arg6[%c0_12, %c0_13], %13 {strides = array<i32>} : memref<16x128xf32, #tpu.memory_space<vmem>>, vector<16x128xf32>,
    return
  }
  func.func @transform_0(%arg0: i32) -> (i32, i32) {
    %c0_i32 = arith.constant 0 : i32
    %c0_i32_0 = arith.constant 0 : i32
    return %arg0, %c0_i32 : i32, i32
  }
  func.func @transform_1(%arg0: i32) -> (i32, i32) {
    %c0_i32 = arith.constant 0 : i32
    %c0_i32_0 = arith.constant 0 : i32
    %c0_i32_1 = arith.constant 0 : i32
    return %c0_i32, %c0_i32_0 : i32, i32
  }
  func.func @transform_2(%arg0: i32) -> (i32, i32) {
    %c0_i32 = arith.constant 0 : i32
    %c0_i32_0 = arith.constant 0 : i32
    %c0_i32_1 = arith.constant 0 : i32
    return %c0_i32, %c0_i32_0 : i32, i32
  }
  func.func @transform_3(%arg0: i32) -> (i32, i32) {
    %c0_i32 = arith.constant 0 : i32
    %c0_i32_0 = arith.constant 0 : i32
    %c0_i32_1 = arith.constant 0 : i32
    return %c0_i32, %c0_i32_0 : i32, i32
  }
  func.func @transform_4(%arg0: i32) -> (i32, i32) {
    %c0_i32 = arith.constant 0 : i32
    %c0_i32_0 = arith.constant 0 : i32
    %c0_i32_1 = arith.constant 0 : i32
    return %c0_i32, %c0_i32_0 : i32, i32
  }
  func.func @transform_5(%arg0: i32) -> (i32, i32) {
    %c0_i32 = arith.constant 0 : i32
    %c0_i32_0 = arith.constant 0 : i32
    return %arg0, %c0_i32 : i32, i32
  }
  func.func @transform_6(%arg0: i32) -> (i32, i32) {
    %c0_i32 = arith.constant 0 : i32
    %c0_i32_0 = arith.constant 0 : i32
    return %arg0, %c0_i32 : i32, i32
  }
}

</mosaic_0001>

<llo_original>
// kernel: tpu_custom_call.1
$region0: #{tpu_custom_call.1}
  #allocation0 [shape = 'u32[]', space=smem, size = 0x4, offset = 0x4, fixed_abs, tag = 'smem constant byte address 0x4 - core index']
  #allocation1 [shape = 'u32[144,128]{1,0:T(1,128)}', space=vmem, size = 0x12000, scoped, tag = 'internal scratch']
  %s0 = inlined_call_operand.hbm [shape: bf16[16,128], index: 0, kind: input, shape index: {}]
  %s1 = inlined_call_operand.hbm [shape: bf16[128,128], index: 1, kind: input, shape index: {}]
  %s2 = inlined_call_operand.vmem [shape: f32[1,128], index: 2, kind: input, shape index: {}]
  %s3 = inlined_call_operand.hbm [shape: bf16[128,128], index: 3, kind: input, shape index: {}]
  %s4 = inlined_call_operand.vmem [shape: f32[1,128], index: 4, kind: input, shape index: {}]
  %s5 = inlined_call_operand.hbm [shape: f32[16,128], index: 5, kind: output, shape index: {0}]
  %s6 = inlined_call_operand.hbm [shape: bf16[16,128], index: 6, kind: output, shape index: {1}]
  %7 = xla_tuple %s5, %s6
  %s8 = sld [smem:[#allocation0]]
  $region50: #{tpu_custom_call.1} parent=0
    _
  %s10 = ssub.s32 1, %s8
  %s11 = scalar_select 0, %s10, %s8
  $region1: #{tpu_custom_call.1} parent=0
    #allocation2 [shape = 'u8[4096]{0}', space=vmem, size = 0x1000, scoped, tag = 'input window, operand 0, single buffered']
    #allocation3 [shape = 's32[1]{0}', space=sflag, size = 0x4, scoped, tag = 'scoped memory for tpu_custom_call.1']
    #allocation4 [shape = 's32[1]{0}', space=sflag, size = 0x4, scoped, tag = 'scoped memory for tpu_custom_call.1']
    #allocation5 [shape = 'u8[32768]{0}', space=vmem, size = 0x8000, scoped, tag = 'input window, operand 1, single buffered']
    #allocation6 [shape = 's32[1]{0}', space=sflag, size = 0x4, scoped, tag = 'scoped memory for tpu_custom_call.1']
    #allocation7 [shape = 'u8[32768]{0}', space=vmem, size = 0x8000, scoped, tag = 'input window, operand 3, single buffered']
    #allocation8 [shape = 'u8[8192]{0}', space=vmem, size = 0x2000, scoped, tag = 'output window, operand 0, single buffered']
    #allocation9 [shape = 'u8[4096]{0}', space=vmem, size = 0x1000, scoped, tag = 'output window, operand 1, single buffered']
    #allocation10 [shape = 's32[1]{0}', space=sflag, size = 0x4, scoped, tag = 'scoped memory for tpu_custom_call.1']
    %12 = vsyncpa [#allocation3], 0
    %13 = vsyncpa [#allocation6], 0
    %14 = vsyncpa [#allocation4], 0
    %15 = vsyncpa [#allocation10], 0
    // Predicated region
    $region2: #{tpu_custom_call.1} parent=1 // pred_check
      _
    $region3: #{tpu_custom_call.1} parent=1 // pred_check_branch
      %17 = sbr.rel (0) target = $region5
    $region4: #{tpu_custom_call.1} parent=1 // pred_region
      %s19 = ssub.s32 128, 128
      %20 = vsyncadd [#allocation3], %s19
      %s21 = sshll.u32 [#allocation2], 4
      %s22 = int_to_ptr.vmem [resolvable:$true] %s21
      %27 = dma.hbm_to_vmem [thread:$0]  %s0, 128, %s22, [#allocation3], 64, 64, 4
    $region5: #{tpu_custom_call.1} parent=1 // pred_fallthru
      _
    // Predicated region
    $region6: #{tpu_custom_call.1} parent=1 // pred_check
      _
    $region7: #{tpu_custom_call.1} parent=1 // pred_check_branch
      %29 = sbr.rel (0) target = $region9
    $region8: #{tpu_custom_call.1} parent=1 // pred_region
      %s31 = ssub.s32 1024, 1024
      %32 = vsyncadd [#allocation6], %s31
      %s33 = sshll.u32 [#allocation5], 4
      %s34 = int_to_ptr.vmem [resolvable:$true] %s33
      %39 = dma.hbm_to_vmem [thread:$0]  %s1, 1024, %s34, [#allocation6], 64, 64, 4
    $region9: #{tpu_custom_call.1} parent=1 // pred_fallthru
      _
    // Predicated region
    $region10: #{tpu_custom_call.1} parent=1 // pred_check
      _
    $region11: #{tpu_custom_call.1} parent=1 // pred_check_branch
      %41 = sbr.rel (0) target = $region13
    $region12: #{tpu_custom_call.1} parent=1 // pred_region
      _
    $region13: #{tpu_custom_call.1} parent=1 // pred_fallthru
      _
    // Predicated region
    $region14: #{tpu_custom_call.1} parent=1 // pred_check
      _
    $region15: #{tpu_custom_call.1} parent=1 // pred_check_branch
      %43 = sbr.rel (0) target = $region17
    $region16: #{tpu_custom_call.1} parent=1 // pred_region
      %s45 = ssub.s32 1024, 1024
      %46 = vsyncadd [#allocation6], %s45
      %s47 = sshll.u32 [#allocation7], 4
      %s48 = int_to_ptr.vmem [resolvable:$true] %s47
      %53 = dma.hbm_to_vmem [thread:$0]  %s3, 1024, %s48, [#allocation6], 64, 64, 4
    $region17: #{tpu_custom_call.1} parent=1 // pred_fallthru
      _
    // Predicated region
    $region18: #{tpu_custom_call.1} parent=1 // pred_check
      _
    $region19: #{tpu_custom_call.1} parent=1 // pred_check_branch
      %55 = sbr.rel (0) target = $region21
    $region20: #{tpu_custom_call.1} parent=1 // pred_region
      _
    $region21: #{tpu_custom_call.1} parent=1 // pred_fallthru
      _
    // Predicated region
    $region22: #{tpu_custom_call.1} parent=1 // pred_check
      _
    $region23: #{tpu_custom_call.1} parent=1 // pred_check_branch
      %57 = sbr.rel (0) target = $region25
    $region24: #{tpu_custom_call.1} parent=1 // pred_region
      %58 = dma.done [#allocation3], 128
    $region25: #{tpu_custom_call.1} parent=1 // pred_fallthru
      _
    // Predicated region
    $region26: #{tpu_custom_call.1} parent=1 // pred_check
      _
    $region27: #{tpu_custom_call.1} parent=1 // pred_check_branch
      %60 = sbr.rel (0) target = $region29
    $region28: #{tpu_custom_call.1} parent=1 // pred_region
      %61 = dma.done [#allocation6], 1024
    $region29: #{tpu_custom_call.1} parent=1 // pred_fallthru
      _
    // Predicated region
    $region30: #{tpu_custom_call.1} parent=1 // pred_check
      _
    $region31: #{tpu_custom_call.1} parent=1 // pred_check_branch
      %63 = sbr.rel (0) target = $region33
    $region32: #{tpu_custom_call.1} parent=1 // pred_region
      %64 = dma.done [#allocation6], 1024
    $region33: #{tpu_custom_call.1} parent=1 // pred_fallthru
      _
    %v66 = vld [vmem:[#allocation2] sm:$0xf]
    %v67 = vld [vmem:[#allocation2 + $0x4] sm:$0xf]
    %v68 = vld [vmem:[#allocation5] sm:$0xf]
    %v69 = vld [vmem:[#allocation5 + $0x4] sm:$0xf]
    %v70 = vld [vmem:[#allocation5 + $0x8] sm:$0xf]
    %v71 = vld [vmem:[#allocation5 + $0xc] sm:$0xf]
    %v72 = vld [vmem:[#allocation5 + $0x10] sm:$0xf]
    %v73 = vld [vmem:[#allocation5 + $0x14] sm:$0xf]
    %v74 = vld [vmem:[#allocation5 + $0x18] sm:$0xf]
    %v75 = vld [vmem:[#allocation5 + $0x1c] sm:$0xf]
    %v76 = vld [vmem:[#allocation5 + $0x20] sm:$0xf]
    %v77 = vld [vmem:[#allocation5 + $0x24] sm:$0xf]
    %v78 = vld [vmem:[#allocation5 + $0x28] sm:$0xf]
    %v79 = vld [vmem:[#allocation5 + $0x2c] sm:$0xf]
    %v80 = vld [vmem:[#allocation5 + $0x30] sm:$0xf]
    %v81 = vld [vmem:[#allocation5 + $0x34] sm:$0xf]
    %v82 = vld [vmem:[#allocation5 + $0x38] sm:$0xf]
    %v83 = vld [vmem:[#allocation5 + $0x3c] sm:$0xf]
    %v84 = vld [vmem:[%s2] sm:$0x1]
    %v86 = vlaneseq
    %v87 = vshrl.u32 %v86, 7
    %v88 = vsub.s32 0, %v87
    %v89 = vrot.slane %v84, %v88
    %v93 = vunpack.c.l.b16 %v66
    %v94 = vunpack.c.l.b16 %v67
    %v95 = vpack.c.b16 %v94, %v93
    %v113 = vunpack.c.l.b16 %v68
    %v114 = vunpack.c.l.b16 %v69
    %v115 = vunpack.c.l.b16 %v70
    %v116 = vunpack.c.l.b16 %v71
    %v117 = vunpack.c.l.b16 %v72
    %v118 = vunpack.c.l.b16 %v73
    %v119 = vunpack.c.l.b16 %v74
    %v120 = vunpack.c.l.b16 %v75
    %v121 = vunpack.c.l.b16 %v76
    %v122 = vunpack.c.l.b16 %v77
    %v123 = vunpack.c.l.b16 %v78
    %v124 = vunpack.c.l.b16 %v79
    %v125 = vunpack.c.l.b16 %v80
    %v126 = vunpack.c.l.b16 %v81
    %v127 = vunpack.c.l.b16 %v82
    %v128 = vunpack.c.l.b16 %v83
    %v129 = vpack.c.b16 %v114, %v113
    %v130 = vpack.c.b16 %v116, %v115
    %v131 = vpack.c.b16 %v118, %v117
    %v132 = vpack.c.b16 %v120, %v119
    %v133 = vpack.c.b16 %v122, %v121
    %v134 = vpack.c.b16 %v124, %v123
    %v135 = vpack.c.b16 %v126, %v125
    %v136 = vpack.c.b16 %v128, %v127
    %145 = vmatprep.subr.bf16.mxu0 0
    %146 = vmatpush1.bf16.msra.mxu0 %v136
    %147 = vmatprep.subr.bf16.mxu0 0
    %148 = vmatpush1.bf16.msra.mxu0 %v135
    %149 = vmatprep.subr.bf16.mxu0 0
    %150 = vmatpush1.bf16.msra.mxu0 %v134
    %151 = vmatprep.subr.bf16.mxu0 0
    %152 = vmatpush1.bf16.msra.mxu0 %v133
    %153 = vmatprep.subr.bf16.mxu0 0
    %154 = vmatpush1.bf16.msra.mxu0 %v132
    %155 = vmatprep.subr.bf16.mxu0 0
    %156 = vmatpush1.bf16.msra.mxu0 %v131
    %157 = vmatprep.subr.bf16.mxu0 0
    %158 = vmatpush1.bf16.msra.mxu0 %v130
    %159 = vmatprep.subr.bf16.mxu0 0
    %160 = vmatpush1.bf16.msra.mxu0 %v129
    %161 = vmatprep.subr.bf16.mxu0 0
    %162 = vmatpush2.bf16.msra.mxu0 0
    %163 = vmatprep.subr.bf16.mxu0 0
    %164 = vmatpush2.bf16.msra.mxu0 0
    %165 = vmatprep.subr.bf16.mxu0 0
    %166 = vmatpush2.bf16.msra.mxu0 0
    %167 = vmatprep.subr.bf16.mxu0 0
    %168 = vmatpush2.bf16.msra.mxu0 0
    %169 = vmatprep.subr.bf16.mxu0 0
    %170 = vmatpush2.bf16.msra.mxu0 0
    %171 = vmatprep.subr.bf16.mxu0 0
    %172 = vmatpush2.bf16.msra.mxu0 0
    %173 = vmatprep.subr.bf16.mxu0 0
    %174 = vmatpush2.bf16.msra.mxu0 0
    %175 = vmatprep.subr.bf16.mxu0 0
    %176 = vmatpush2.bf16.msra.mxu0 0
    %177 = vmatprep.mubr.bf16.mxu0 0
    %178 = vmatmul.mubr.bf16.gmra.mxu0 %v95
    %v179 = vpop.f32.mrf.mxu0
    %v180 = vadd.f32 %v89, %v179
    %v181 = vpop.f32.mrf.mxu0
    %v182 = vpop.f32.mrf.mxu0
    %v183 = vadd.f32 %v89, %v182
    %v184 = vpop.f32.mrf.mxu0
    %185 = vdwg.mxu0
    %v186 = vtanh.pop %v180
    %v187 = vtanh.pop %v183
    %v188 = vpack.c.bf16 %v187, %v186
    %v190 = vunpack.c.l.b16 %v188
    %v191 = vunpack.c.h.b16 %v188
    %v192 = vpack.c.b16 %v190, %v190
    %v193 = vpack.c.b16 %v191, %v191
    %196 = vst [vmem:[#allocation9] sm:$0xf] %v192
    %197 = vst [vmem:[#allocation9 + $0x4] sm:$0xf] %v193
    %v198 = vld [vmem:[#allocation7] sm:$0xf]
    %v199 = vld [vmem:[#allocation7 + $0x4] sm:$0xf]
    %v200 = vld [vmem:[#allocation7 + $0x8] sm:$0xf]
    %v201 = vld [vmem:[#allocation7 + $0xc] sm:$0xf]
    %v202 = vld [vmem:[#allocation7 + $0x10] sm:$0xf]
    %v203 = vld [vmem:[#allocation7 + $0x14] sm:$0xf]
    %v204 = vld [vmem:[#allocation7 + $0x18] sm:$0xf]
    %v205 = vld [vmem:[#allocation7 + $0x1c] sm:$0xf]
    %v206 = vld [vmem:[#allocation7 + $0x20] sm:$0xf]
    %v207 = vld [vmem:[#allocation7 + $0x24] sm:$0xf]
    %v208 = vld [vmem:[#allocation7 + $0x28] sm:$0xf]
    %v209 = vld [vmem:[#allocation7 + $0x2c] sm:$0xf]
    %v210 = vld [vmem:[#allocation7 + $0x30] sm:$0xf]
    %v211 = vld [vmem:[#allocation7 + $0x34] sm:$0xf]
    %v212 = vld [vmem:[#allocation7 + $0x38] sm:$0xf]
    %v213 = vld [vmem:[#allocation7 + $0x3c] sm:$0xf]
    %v214 = vld [vmem:[%s4] sm:$0x1]
    %v216 = vlaneseq
    %v217 = vshrl.u32 %v216, 7
    %v218 = vsub.s32 0, %v217
    %v219 = vrot.slane %v214, %v218
    %v237 = vunpack.c.l.b16 %v198
    %v238 = vunpack.c.l.b16 %v199
    %v239 = vunpack.c.l.b16 %v200
    %v240 = vunpack.c.l.b16 %v201
    %v241 = vunpack.c.l.b16 %v202
    %v242 = vunpack.c.l.b16 %v203
    %v243 = vunpack.c.l.b16 %v204
    %v244 = vunpack.c.l.b16 %v205
    %v245 = vunpack.c.l.b16 %v206
    %v246 = vunpack.c.l.b16 %v207
    %v247 = vunpack.c.l.b16 %v208
    %v248 = vunpack.c.l.b16 %v209
    %v249 = vunpack.c.l.b16 %v210
    %v250 = vunpack.c.l.b16 %v211
    %v251 = vunpack.c.l.b16 %v212
    %v252 = vunpack.c.l.b16 %v213
    %v253 = vpack.c.b16 %v238, %v237
    %v254 = vpack.c.b16 %v240, %v239
    %v255 = vpack.c.b16 %v242, %v241
    %v256 = vpack.c.b16 %v244, %v243
    %v257 = vpack.c.b16 %v246, %v245
    %v258 = vpack.c.b16 %v248, %v247
    %v259 = vpack.c.b16 %v250, %v249
    %v260 = vpack.c.b16 %v252, %v251
    %269 = vmatprep.subr.bf16.mxu0 0
    %270 = vmatpush1.bf16.msra.mxu0 %v260
    %271 = vmatprep.subr.bf16.mxu0 0
    %272 = vmatpush1.bf16.msra.mxu0 %v259
    %273 = vmatprep.subr.bf16.mxu0 0
    %274 = vmatpush1.bf16.msra.mxu0 %v258
    %275 = vmatprep.subr.bf16.mxu0 0
    %276 = vmatpush1.bf16.msra.mxu0 %v257
    %277 = vmatprep.subr.bf16.mxu0 0
    %278 = vmatpush1.bf16.msra.mxu0 %v256
    %279 = vmatprep.subr.bf16.mxu0 0
    %280 = vmatpush1.bf16.msra.mxu0 %v255
    %281 = vmatprep.subr.bf16.mxu0 0
    %282 = vmatpush1.bf16.msra.mxu0 %v254
    %283 = vmatprep.subr.bf16.mxu0 0
    %284 = vmatpush1.bf16.msra.mxu0 %v253
    %285 = vmatprep.subr.bf16.mxu0 0
    %286 = vmatpush2.bf16.msra.mxu0 0
    %287 = vmatprep.subr.bf16.mxu0 0
    %288 = vmatpush2.bf16.msra.mxu0 0
    %289 = vmatprep.subr.bf16.mxu0 0
    %290 = vmatpush2.bf16.msra.mxu0 0
    %291 = vmatprep.subr.bf16.mxu0 0
    %292 = vmatpush2.bf16.msra.mxu0 0
    %293 = vmatprep.subr.bf16.mxu0 0
    %294 = vmatpush2.bf16.msra.mxu0 0
    %295 = vmatprep.subr.bf16.mxu0 0
    %296 = vmatpush2.bf16.msra.mxu0 0
    %297 = vmatprep.subr.bf16.mxu0 0
    %298 = vmatpush2.bf16.msra.mxu0 0
    %299 = vmatprep.subr.bf16.mxu0 0
    %300 = vmatpush2.bf16.msra.mxu0 0
    %301 = vmatprep.mubr.bf16.mxu0 0
    %302 = vmatmul.mubr.bf16.gmra.mxu0 %v188
    %v303 = vpop.f32.mrf.mxu0
    %v304 = vadd.f32 %v219, %v303
    %v305 = vpop.f32.mrf.mxu0
    %v306 = vpop.f32.mrf.mxu0
    %v307 = vadd.f32 %v219, %v306
    %v308 = vpop.f32.mrf.mxu0
    %309 = vdwg.mxu0
    %310 = vst [vmem:[#allocation8] sm:$0xff] %v304
    %311 = vst [vmem:[#allocation8 + $0x8] sm:$0xff] %v307
    // Predicated region
    $region34: #{tpu_custom_call.1} parent=1 // pred_check
      _
    $region35: #{tpu_custom_call.1} parent=1 // pred_check_branch
      %313 = sbr.rel (0) target = $region37
    $region36: #{tpu_custom_call.1} parent=1 // pred_region
      %s315 = ssub.s32 256, 256
      %316 = vsyncadd [#allocation4], %s315
      %s317 = sshll.u32 [#allocation8], 4
      %s318 = int_to_ptr.vmem [resolvable:$true] %s317
      %323 = dma.vmem_to_hbm [thread:$0]  %s318, 256, %s5, [#allocation4], 128, 128, 8
    $region37: #{tpu_custom_call.1} parent=1 // pred_fallthru
      _
    // Predicated region
    $region38: #{tpu_custom_call.1} parent=1 // pred_check
      _
    $region39: #{tpu_custom_call.1} parent=1 // pred_check_branch
      %325 = sbr.rel (0) target = $region41
    $region40: #{tpu_custom_call.1} parent=1 // pred_region
      %s327 = ssub.s32 128, 128
      %328 = vsyncadd [#allocation10], %s327
      %s329 = sshll.u32 [#allocation9], 4
      %s330 = int_to_ptr.vmem [resolvable:$true] %s329
      %335 = dma.vmem_to_hbm [thread:$0]  %s330, 128, %s6, [#allocation10], 64, 64, 4
    $region41: #{tpu_custom_call.1} parent=1 // pred_fallthru
      _
    // Predicated region
    $region42: #{tpu_custom_call.1} parent=1 // pred_check
      _
    $region43: #{tpu_custom_call.1} parent=1 // pred_check_branch
      %337 = sbr.rel (0) target = $region45
    $region44: #{tpu_custom_call.1} parent=1 // pred_region
      %338 = dma.done [#allocation4], 256
    $region45: #{tpu_custom_call.1} parent=1 // pred_fallthru
      _
    // Predicated region
    $region46: #{tpu_custom_call.1} parent=1 // pred_check
      _
    $region47: #{tpu_custom_call.1} parent=1 // pred_check_branch
      %340 = sbr.rel (0) target = $region49
    $region48: #{tpu_custom_call.1} parent=1 // pred_region
      %341 = dma.done [#allocation10], 128
    $region49: #{tpu_custom_call.1} parent=1 // pred_fallthru
      _
    %342 = vsyncpa [#allocation3], 1
    %343 = vsyncpa [#allocation6], 1
    %344 = vsyncpa [#allocation4], 1
    %345 = vsyncpa [#allocation10], 1

</llo_original>
